<compile_context>
chip_gen: v6e
topology: v6e:2x2x1
jax: 0.10.0
libtpu: 0.0.40
codegen_flags: <defaults>
</compile_context>

<pallas_src>
import numpy as np
import jax
import jax.numpy as jnp
from jax import lax
from jax.experimental import pallas as pl
from jax.experimental.pallas import tpu as pltpu

NUM_CLS = 18          # 7 race + 2 gender + 9 age
NUM_CLS_PAD = 32      # padded to a bf16 sublane multiple
OUT_LANES = 128       # lane-dense output block width
RACE_LO, RACE_HI = 0, 7
GEN_LO, GEN_HI = 7, 9
AGE_LO, AGE_HI = 9, 18

_TARGET_BLOCK_BYTES = 4 << 20      # ~4 MiB f32 activation block per grid step
_W_RESIDENT_MAX_BYTES = 8 << 20    # keep transposed weight VMEM-resident up to this
_VMEM_CAP_BYTES = 48 << 20         # v7x has only 64 MiB physical VMEM; stay below


def _round_up(x, m):
    return ((x + m - 1) // m) * m


def _cdiv(a, b):
    return (a + b - 1) // b


def _choose_tiles(B, D):
    # Batch tile: full extent for small B; otherwise a multiple of 16 sublanes
    # and at least two grid steps so both v7x TensorCores get work.
    if B < 32:
        tb = B
    else:
        tb = min(256, _round_up(_cdiv(B, 2), 16))
    # Feature (K) tile: size so the f32 activation block is ~4 MiB.
    tk = _TARGET_BLOCK_BYTES // max(tb * 4, 1)
    tk = max(512, min(tk, 8192))
    tk = _round_up(tk, 128)
    if D <= tk:
        tk = D                      # single full-extent K block
    return tb, tk


def argmax_model_forward(x_nchw, w, b):
    """x_nchw: (B, C, H, W) f32;  w: (D, 18) f32;  b: (18,) f32.
    Returns (race, gender, age) as int32 (B,) arrays."""
    B = x_nchw.shape[0]
    D = int(np.prod(x_nchw.shape[1:]))
    feats = x_nchw.reshape(B, D)          # metadata-only reshape; stays f32, unpadded

    tb, tk = _choose_tiles(B, D)
    n_i = _cdiv(B, tb)
    n_k = _cdiv(D, tk)
    Dp = n_k * tk                          # padded K extent for the (tiny) weight only
    ragged_k = (D % tk) != 0

    # Weight stored transposed (classes on sublanes, features on lanes) so only
    # 32 sublanes are used instead of lane-padding 18 -> 128.  Padding/casting
    # the tiny weight + bias is cheap; the large activation is untouched.
    wt_pad = jnp.zeros((NUM_CLS_PAD, Dp), jnp.bfloat16).at[:NUM_CLS, :D].set(
        w.T.astype(jnp.bfloat16))
    b_pad = jnp.zeros((1, NUM_CLS_PAD), jnp.float32).at[0, :NUM_CLS].set(
        b.astype(jnp.float32))

    # Keep the whole transposed weight VMEM-resident (constant block index =>
    # DMA'd once for the entire grid) when small enough; otherwise K-tiled.
    w_resident = NUM_CLS_PAD * Dp * 2 <= _W_RESIDENT_MAX_BYTES
    if w_resident:
        w_spec = pl.BlockSpec((NUM_CLS_PAD, Dp), lambda i, k: (0, 0))
    else:
        w_spec = pl.BlockSpec((NUM_CLS_PAD, tk), lambda i, k: (0, k))

    def kernel(x_ref, wt_ref, b_ref, out_ref, acc_ref):
        # x_ref:   (tb, tk)            f32 activation tile (cast to bf16 here)
        # wt_ref:  (32, Dp) or (32,tk) bf16 transposed weight
        # b_ref:   (1, 32)             f32 bias (padded cols are 0)
        # out_ref: (tb, OUT_LANES)     int32; cols 0/1/2 = race/gender/age
        # acc_ref: (tb, 32)            f32 logits accumulator
        k = pl.program_id(1)

        @pl.when(k == 0)
        def _():
            # fold the bias into the accumulator init
            acc_ref[...] = jnp.broadcast_to(b_ref[...], acc_ref.shape)

        x = x_ref[...]
        if ragged_k:
            # zero the out-of-range K tail of the (partial) last block; the
            # corresponding weight columns are already zero-padded.
            col = lax.broadcasted_iota(jnp.int32, x.shape, 1)
            x = jnp.where(col < (D - k * tk), x, 0.0)
        # TODO(synk): bf16 operands (f32 MXU accumulation) can flip argmax vs.
        # the f32 PyTorch model when two class logits are nearly tied.
        x_bf = x.astype(jnp.bfloat16)      # VPU cast, hidden under the DMA

        if w_resident:
            off = pl.multiple_of(k * tk, 128)
            wt = wt_ref[:, pl.ds(off, tk)]            # (32, tk) bf16
        else:
            wt = wt_ref[...]

        # rhs-transposed matmul: contract the lane (feature) dim of both.
        # TODO(synk): on v7x verify Mosaic emits no per-step vxpose for this
        # transposed-rhs contraction; if it does, pre-transpose the resident
        # weight once into scratch.
        acc_ref[...] += lax.dot_general(
            x_bf, wt,
            dimension_numbers=(((1,), (1,)), ((), ())),
            preferred_element_type=jnp.float32)

        @pl.when(k == n_k - 1)
        def _():
            logits = acc_ref[...]                                 # (tb, 32) f32
            cls = lax.broadcasted_iota(jnp.int32, logits.shape, 1)

            def slice_argmax(lo, hi):
                mask = (cls >= lo) & (cls < hi)
                masked = jnp.where(mask, logits, -jnp.inf)
                mx = jnp.max(masked, axis=-1, keepdims=True)
                # first index achieving the max (matches torch.argmax tie-break)
                idx = jnp.min(jnp.where(mask & (masked == mx), cls, 2**30),
                              axis=-1, keepdims=True)
                return (idx - lo).astype(jnp.int32)               # (tb, 1)

            race = slice_argmax(RACE_LO, RACE_HI)
            gender = slice_argmax(GEN_LO, GEN_HI)
            age = slice_argmax(AGE_LO, AGE_HI)

            out_col = lax.broadcasted_iota(jnp.int32, out_ref.shape, 1)
            out_ref[...] = jnp.where(
                out_col == 0, race,
                jnp.where(out_col == 1, gender,
                          jnp.where(out_col == 2, age, 0)))

    # VMEM budget derived from the actual working set, capped for v7x (64 MiB
    # physical).  Weight counted with 2 buffers to be conservative.
    w_vmem = NUM_CLS_PAD * (Dp if w_resident else tk) * 2
    vmem_need = (2 * tb * tk * 4            # f32 activation blocks, double-buffered
                 + 2 * w_vmem               # weight
                 + 2 * tb * OUT_LANES * 4   # output blocks
                 + tb * NUM_CLS_PAD * 4     # accumulator scratch
                 + 2 * 8 * OUT_LANES * 4)   # bias block (tile-padded)
    vmem_limit = int(min(_VMEM_CAP_BYTES, max(vmem_need + (4 << 20), 16 << 20)))

    w_hbm_bytes = NUM_CLS_PAD * Dp * 2 * (1 if w_resident else n_i)
    cost = pl.CostEstimate(
        flops=2 * B * D * NUM_CLS,
        transcendentals=0,
        bytes_accessed=B * D * 4 + w_hbm_bytes + B * OUT_LANES * 4 + NUM_CLS * 4)

    out = pl.pallas_call(
        kernel,
        out_shape=jax.ShapeDtypeStruct((B, OUT_LANES), jnp.int32),
        grid_spec=pltpu.PrefetchScalarGridSpec(
            num_scalar_prefetch=0,
            grid=(n_i, n_k),
            in_specs=[
                pl.BlockSpec((tb, tk), lambda i, k: (i, k)),
                w_spec,
                pl.BlockSpec((1, NUM_CLS_PAD), lambda i, k: (0, 0)),
            ],
            out_specs=pl.BlockSpec((tb, OUT_LANES), lambda i, k: (i, 0)),
            scratch_shapes=[pltpu.VMEM((tb, NUM_CLS_PAD), jnp.float32)],
        ),
        compiler_params=pltpu.CompilerParams(
            dimension_semantics=("parallel", "arbitrary"),
            vmem_limit_bytes=vmem_limit),
        cost_estimate=cost,
    )(feats, wt_pad, b_pad)

    return out[:B, 0], out[:B, 1], out[:B, 2]


if __name__ == "__main__":
    # TODO(synk): PyTorch argmax returns int64; kernel emits int32 indices.
    key = jax.random.PRNGKey(0)
    kx, kw, kb = jax.random.split(key, 3)

    B, C, H, W = 2, 4, 16, 16
    D = C * H * W

    x = jax.random.normal(kx, (B, C, H, W), dtype=jnp.float32)
    w = jax.random.normal(kw, (D, NUM_CLS), dtype=jnp.float32) / np.sqrt(D)
    b = jax.random.normal(kb, (NUM_CLS,), dtype=jnp.float32) * 0.1

    race, gender, age = argmax_model_forward(x, w, b)
    jax.block_until_ready((race, gender, age))

    # pure-JAX reference with matching bf16-operand / f32-accumulate math
    logits = jnp.dot(x.reshape(B, D).astype(jnp.bfloat16),
                     w.astype(jnp.bfloat16),
                     preferred_element_type=jnp.float32) + b
    race_ref = jnp.argmax(logits[..., 0:7], axis=1).astype(jnp.int32)
    gender_ref = jnp.argmax(logits[..., 7:9], axis=1).astype(jnp.int32)
    age_ref = jnp.argmax(logits[..., 9:18], axis=1).astype(jnp.int32)

    assert jnp.array_equal(race, race_ref)
    assert jnp.array_equal(gender, gender_ref)
    assert jnp.array_equal(age, age_ref)

    print("KERNEL_OK")
</pallas_src>

<mosaic_0001>
module attributes {stable_mosaic.version = 11 : i64} {
  func.func @kernel(%arg0: i32, %arg1: i32, %arg2: memref<2x1024xf32, #tpu.memory_space<vmem>>, %arg3: memref<32x1024xbf16, #tpu.memory_space<vmem>>, %arg4: memref<1x32xf32, #tpu.memory_space<vmem>>, %arg5: memref<2x128xi32, #tpu.memory_space<vmem>>, %arg6: memref<2x32xf32, #tpu.memory_space<vmem>>) attributes {dimension_semantics = [#tpu.dimension_semantics<parallel>, #tpu.dimension_semantics<arbitrary>], iteration_bounds = array<i64: 1, 1>, scalar_prefetch = 0 : i64, scratch_operands = 1 : i64, tpu.core_type = #tpu.core_type<tc>, window_params = [{transform_indices = @transform_0, window_bounds = array<i64: 2, 1024>}, {pipeline_mode = #tpu.pipeline_mode<synchronous>, transform_indices = @transform_1, window_bounds = array<i64: 32, 1024>}, {pipeline_mode = #tpu.pipeline_mode<synchronous>, transform_indices = @transform_2, window_bounds = array<i64: 1, 32>}, {transform_indices = @transform_3, window_bounds = array<i64: 2, 128>}]} {
    %c0_i32 = arith.constant 0 : i32
    %0 = arith.cmpi eq, %arg1, %c0_i32 : i32
    %1 = arith.extui %0 : i1 to i32
    %c0_i32_0 = arith.constant 0 : i32
    %2 = arith.cmpi ne, %1, %c0_i32_0 : i32
    scf.if %2 {
      %c0_9 = arith.constant 0 : index
      %c0_10 = arith.constant 0 : index
      %16 = vector.load %arg4[%c0_9, %c0_10] : memref<1x32xf32, #tpu.memory_space<vmem>>, vector<1x32xf32>
      %17 = vector.shape_cast %16 : vector<1x32xf32> to vector<1x32xf32>
      %18 = vector.broadcast %17 : vector<1x32xf32> to vector<2x32xf32>
      %c0_11 = arith.constant 0 : index
      %c0_12 = arith.constant 0 : index
      %19 = vector.load %arg6[%c0_11, %c0_12] : memref<2x32xf32, #tpu.memory_space<vmem>>, vector<2x32xf32>
      tpu.vector_store %arg6[%c0_11, %c0_12], %18 {strides = array<i32>} : memref<2x32xf32, #tpu.memory_space<vmem>>, vector<2x32xf32>,
    } else {
    }
    %c0 = arith.constant 0 : index
    %c0_1 = arith.constant 0 : index
    %3 = vector.load %arg2[%c0, %c0_1] : memref<2x1024xf32, #tpu.memory_space<vmem>>, vector<2x1024xf32>
    %4 = arith.truncf %3 : vector<2x1024xf32> to vector<2x1024xbf16>
    %c1024_i32 = arith.constant 1024 : i32
    %5 = arith.muli %arg1, %c1024_i32 : i32
    %6 = tpu.assume_multiple %5, 128 : i32
    %c0_2 = arith.constant 0 : index
    %7 = arith.index_cast %6 : i32 to index
    %8 = vector.load %arg3[%c0_2, %7] : memref<32x1024xbf16, #tpu.memory_space<vmem>>, vector<32x1024xbf16>
    %c0_3 = arith.constant 0 : index
    %c0_4 = arith.constant 0 : index
    %9 = vector.load %arg6[%c0_3, %c0_4] : memref<2x32xf32, #tpu.memory_space<vmem>>, vector<2x32xf32>
    %cst = arith.constant dense<0.000000e+00> : vector<2x32xf32>
    %10 = tpu.matmul %4, %8, %cst {dimension_numbers = #tpu.dot_dimension_numbers<[1], [1], [0], [0], [0, 0, 1, 0], [], []>} : vector<2x1024xbf16>, vector<32x1024xbf16>, vector<2x32xf32> -> vector<2x32xf32>
    %11 = arith.addf %9, %10 : vector<2x32xf32>
    %c0_5 = arith.constant 0 : index
    %c0_6 = arith.constant 0 : index
    %12 = vector.load %arg6[%c0_5, %c0_6] : memref<2x32xf32, #tpu.memory_space<vmem>>, vector<2x32xf32>
    tpu.vector_store %arg6[%c0_5, %c0_6], %11 {strides = array<i32>} : memref<2x32xf32, #tpu.memory_space<vmem>>, vector<2x32xf32>,
    %c0_i32_7 = arith.constant 0 : i32
    %13 = arith.cmpi eq, %arg1, %c0_i32_7 : i32
    %14 = arith.extui %13 : i1 to i32
    %c0_i32_8 = arith.constant 0 : i32
    %15 = arith.cmpi ne, %14, %c0_i32_8 : i32
    scf.if %15 {
      %c0_9 = arith.constant 0 : index
      %c0_10 = arith.constant 0 : index
      %16 = vector.load %arg6[%c0_9, %c0_10] : memref<2x32xf32, #tpu.memory_space<vmem>>, vector<2x32xf32>
      %17 = tpu.iota {dimensions = array<i32: 1>} : vector<2x32xi32>
      %c0_i32_11 = arith.constant 0 : i32
      %18 = vector.broadcast %c0_i32_11 : i32 to vector<2x32xi32>
      %19 = arith.cmpi sge, %17, %18 : vector<2x32xi32>
      %c7_i32 = arith.constant 7 : i32
      %20 = vector.broadcast %c7_i32 : i32 to vector<2x32xi32>
      %21 = arith.cmpi slt, %17, %20 : vector<2x32xi32>
      %22 = arith.andi %19, %21 : vector<2x32xi1>
      %cst_12 = arith.constant 0xFF800000 : f32
      %23 = vector.broadcast %cst_12 : f32 to vector<2x32xf32>
      %24 = arith.select %22, %16, %23 : vector<2x32xi1>, vector<2x32xf32>
      %cst_13 = arith.constant dense<0xFF800000> : vector<2xf32>
      %25 = vector.multi_reduction <maximumf>, %24, %cst_13 [1] : vector<2x32xf32> to vector<2xf32>
      %26 = vector.shape_cast %25 : vector<2xf32> to vector<2x1xf32>
      %27 = vector.broadcast %26 : vector<2x1xf32> to vector<2x32xf32>
      %28 = arith.cmpf oeq, %24, %27 : vector<2x32xf32>
      %29 = arith.andi %22, %28 : vector<2x32xi1>
      %c1073741824_i32 = arith.constant 1073741824 : i32
      %30 = vector.broadcast %c1073741824_i32 : i32 to vector<2x32xi32>
      %31 = arith.select %29, %17, %30 : vector<2x32xi1>, vector<2x32xi32>
      %cst_14 = arith.constant dense<2147483647> : vector<2xi32>
      %32 = vector.multi_reduction <minsi>, %31, %cst_14 [1] : vector<2x32xi32> to vector<2xi32>
      %33 = vector.shape_cast %32 : vector<2xi32> to vector<2x1xi32>
      %c0_i32_15 = arith.constant 0 : i32
      %34 = vector.broadcast %c0_i32_15 : i32 to vector<2x1xi32>
      %35 = arith.subi %33, %34 : vector<2x1xi32>
      %c7_i32_16 = arith.constant 7 : i32
      %36 = vector.broadcast %c7_i32_16 : i32 to vector<2x32xi32>
      %37 = arith.cmpi sge, %17, %36 : vector<2x32xi32>
      %c9_i32 = arith.constant 9 : i32
      %38 = vector.broadcast %c9_i32 : i32 to vector<2x32xi32>
      %39 = arith.cmpi slt, %17, %38 : vector<2x32xi32>
      %40 = arith.andi %37, %39 : vector<2x32xi1>
      %cst_17 = arith.constant 0xFF800000 : f32
      %41 = vector.broadcast %cst_17 : f32 to vector<2x32xf32>
      %42 = arith.select %40, %16, %41 : vector<2x32xi1>, vector<2x32xf32>
      %cst_18 = arith.constant dense<0xFF800000> : vector<2xf32>
      %43 = vector.multi_reduction <maximumf>, %42, %cst_18 [1] : vector<2x32xf32> to vector<2xf32>
      %44 = vector.shape_cast %43 : vector<2xf32> to vector<2x1xf32>
      %45 = vector.broadcast %44 : vector<2x1xf32> to vector<2x32xf32>
      %46 = arith.cmpf oeq, %42, %45 : vector<2x32xf32>
      %47 = arith.andi %40, %46 : vector<2x32xi1>
      %c1073741824_i32_19 = arith.constant 1073741824 : i32
      %48 = vector.broadcast %c1073741824_i32_19 : i32 to vector<2x32xi32>
      %49 = arith.select %47, %17, %48 : vector<2x32xi1>, vector<2x32xi32>
      %cst_20 = arith.constant dense<2147483647> : vector<2xi32>
      %50 = vector.multi_reduction <minsi>, %49, %cst_20 [1] : vector<2x32xi32> to vector<2xi32>
      %51 = vector.shape_cast %50 : vector<2xi32> to vector<2x1xi32>
      %c7_i32_21 = arith.constant 7 : i32
      %52 = vector.broadcast %c7_i32_21 : i32 to vector<2x1xi32>
      %53 = arith.subi %51, %52 : vector<2x1xi32>
      %c9_i32_22 = arith.constant 9 : i32
      %54 = vector.broadcast %c9_i32_22 : i32 to vector<2x32xi32>
      %55 = arith.cmpi sge, %17, %54 : vector<2x32xi32>
      %c18_i32 = arith.constant 18 : i32
      %56 = vector.broadcast %c18_i32 : i32 to vector<2x32xi32>
      %57 = arith.cmpi slt, %17, %56 : vector<2x32xi32>
      %58 = arith.andi %55, %57 : vector<2x32xi1>
      %cst_23 = arith.constant 0xFF800000 : f32
      %59 = vector.broadcast %cst_23 : f32 to vector<2x32xf32>
      %60 = arith.select %58, %16, %59 : vector<2x32xi1>, vector<2x32xf32>
      %cst_24 = arith.constant dense<0xFF800000> : vector<2xf32>
      %61 = vector.multi_reduction <maximumf>, %60, %cst_24 [1] : vector<2x32xf32> to vector<2xf32>
      %62 = vector.shape_cast %61 : vector<2xf32> to vector<2x1xf32>
      %63 = vector.broadcast %62 : vector<2x1xf32> to vector<2x32xf32>
      %64 = arith.cmpf oeq, %60, %63 : vector<2x32xf32>
      %65 = arith.andi %58, %64 : vector<2x32xi1>
      %c1073741824_i32_25 = arith.constant 1073741824 : i32
      %66 = vector.broadcast %c1073741824_i32_25 : i32 to vector<2x32xi32>
      %67 = arith.select %65, %17, %66 : vector<2x32xi1>, vector<2x32xi32>
      %cst_26 = arith.constant dense<2147483647> : vector<2xi32>
      %68 = vector.multi_reduction <minsi>, %67, %cst_26 [1] : vector<2x32xi32> to vector<2xi32>
      %69 = vector.shape_cast %68 : vector<2xi32> to vector<2x1xi32>
      %c9_i32_27 = arith.constant 9 : i32
      %70 = vector.broadcast %c9_i32_27 : i32 to vector<2x1xi32>
      %71 = arith.subi %69, %70 : vector<2x1xi32>
      %72 = tpu.iota {dimensions = array<i32: 1>} : vector<2x128xi32>
      %c0_i32_28 = arith.constant 0 : i32
      %73 = vector.broadcast %c0_i32_28 : i32 to vector<2x128xi32>
      %74 = arith.cmpi eq, %72, %73 : vector<2x128xi32>
      %c1_i32 = arith.constant 1 : i32
      %75 = vector.broadcast %c1_i32 : i32 to vector<2x128xi32>
      %76 = arith.cmpi eq, %72, %75 : vector<2x128xi32>
      %c2_i32 = arith.constant 2 : i32
      %77 = vector.broadcast %c2_i32 : i32 to vector<2x128xi32>
      %78 = arith.cmpi eq, %72, %77 : vector<2x128xi32>
      %c0_i32_29 = arith.constant 0 : i32
      %79 = vector.shape_cast %71 : vector<2x1xi32> to vector<2x1xi32>
      %80 = vector.broadcast %79 : vector<2x1xi32> to vector<2x128xi32>
      %81 = vector.broadcast %c0_i32_29 : i32 to vector<2x128xi32>
      %82 = arith.select %78, %80, %81 : vector<2x128xi1>, vector<2x128xi32>
      %83 = vector.shape_cast %53 : vector<2x1xi32> to vector<2x1xi32>
      %84 = vector.broadcast %83 : vector<2x1xi32> to vector<2x128xi32>
      %85 = arith.select %76, %84, %82 : vector<2x128xi1>, vector<2x128xi32>
      %86 = vector.shape_cast %35 : vector<2x1xi32> to vector<2x1xi32>
      %87 = vector.broadcast %86 : vector<2x1xi32> to vector<2x128xi32>
      %88 = arith.select %74, %87, %85 : vector<2x128xi1>, vector<2x128xi32>
      %c0_30 = arith.constant 0 : index
      %c0_31 = arith.constant 0 : index
      %89 = vector.load %arg5[%c0_30, %c0_31] : memref<2x128xi32, #tpu.memory_space<vmem>>, vector<2x128xi32>
      tpu.vector_store %arg5[%c0_30, %c0_31], %88 {strides = array<i32>} : memref<2x128xi32, #tpu.memory_space<vmem>>, vector<2x128xi32>,
    } else {
    }
    return
  }
  func.func @transform_0(%arg0: i32, %arg1: i32) -> (i32, i32) {
    %c0_i32 = arith.constant 0 : i32
    return %arg0, %arg1 : i32, i32
  }
  func.func @transform_1(%arg0: i32, %arg1: i32) -> (i32, i32) {
    %c0_i32 = arith.constant 0 : i32
    %c0_i32_0 = arith.constant 0 : i32
    %c0_i32_1 = arith.constant 0 : i32
    return %c0_i32, %c0_i32_0 : i32, i32
  }
  func.func @transform_2(%arg0: i32, %arg1: i32) -> (i32, i32) {
    %c0_i32 = arith.constant 0 : i32
    %c0_i32_0 = arith.constant 0 : i32
    %c0_i32_1 = arith.constant 0 : i32
    return %c0_i32, %c0_i32_0 : i32, i32
  }
  func.func @transform_3(%arg0: i32, %arg1: i32) -> (i32, i32) {
    %c0_i32 = arith.constant 0 : i32
    %c0_i32_0 = arith.constant 0 : i32
    return %arg0, %c0_i32 : i32, i32
  }
}

</mosaic_0001>

<llo_original>
// kernel: tpu_custom_call.1
$region0: #{tpu_custom_call.1}
  #allocation0 [shape = 'u32[]', space=smem, size = 0x4, offset = 0x4, fixed_abs, tag = 'smem constant byte address 0x4 - core index']
  #allocation1 [shape = 'u32[144,128]{1,0:T(1,128)}', space=vmem, size = 0x12000, scoped, tag = 'internal scratch']
  #allocation2 [shape = 'f32[2,32]{1,0:T(2,128)}', space=vmem, size = 0x400, scoped, tag = 'scratch operand']
  %s0 = inlined_call_operand.hbm [shape: f32[2,1024], index: 0, kind: input, shape index: {}]
  %s1 = inlined_call_operand.hbm [shape: bf16[32,1024], index: 1, kind: input, shape index: {}]
  %s2 = inlined_call_operand.vmem [shape: f32[1,32], index: 2, kind: input, shape index: {}]
  %s3 = inlined_call_operand.hbm [shape: s32[2,128], index: 3, kind: output, shape index: {}]
  %s4 = sld [smem:[#allocation0]]
  $region38: #{tpu_custom_call.1} parent=0
    _
  %s6 = ssub.s32 1, %s4
  %s7 = scalar_select 0, %s6, %s4
  $region1: #{tpu_custom_call.1} parent=0
    #allocation3 [shape = 'u8[8192]{0}', space=vmem, size = 0x2000, scoped, tag = 'input window, operand 0, single buffered']
    #allocation4 [shape = 's32[1]{0}', space=sflag, size = 0x4, scoped, tag = 'scoped memory for tpu_custom_call.1']
    #allocation5 [shape = 's32[1]{0}', space=sflag, size = 0x4, scoped, tag = 'scoped memory for tpu_custom_call.1']
    #allocation6 [shape = 'u8[65536]{0}', space=vmem, size = 0x10000, scoped, tag = 'input window, operand 1, single buffered']
    #allocation7 [shape = 's32[1]{0}', space=sflag, size = 0x4, scoped, tag = 'scoped memory for tpu_custom_call.1']
    #allocation8 [shape = 'u8[1024]{0}', space=vmem, size = 0x400, scoped, tag = 'output window, operand 0, single buffered']
    %8 = vsyncpa [#allocation4], 0
    %9 = vsyncpa [#allocation7], 0
    %10 = vsyncpa [#allocation5], 0
    // Predicated region
    $region2: #{tpu_custom_call.1} parent=1 // pred_check
      _
    $region3: #{tpu_custom_call.1} parent=1 // pred_check_branch
      %12 = sbr.rel (0) target = $region5
    $region4: #{tpu_custom_call.1} parent=1 // pred_region
      %s14 = ssub.s32 256, 256
      %15 = vsyncadd [#allocation4], %s14
      %s17 = sshll.u32 [#allocation3], 4
      %s18 = int_to_ptr.vmem [resolvable:$true] %s17
      %20 = dma.hbm_to_vmem [thread:$0]  %s0, 256, %s18, [#allocation4]
    $region5: #{tpu_custom_call.1} parent=1 // pred_fallthru
      _
    // Predicated region
    $region6: #{tpu_custom_call.1} parent=1 // pred_check
      _
    $region7: #{tpu_custom_call.1} parent=1 // pred_check_branch
      %22 = sbr.rel (0) target = $region9
    $region8: #{tpu_custom_call.1} parent=1 // pred_region
      %s24 = ssub.s32 2048, 2048
      %25 = vsyncadd [#allocation7], %s24
      %s26 = sshll.u32 [#allocation6], 4
      %s27 = int_to_ptr.vmem [resolvable:$true] %s26
      %32 = dma.hbm_to_vmem [thread:$0]  %s1, 2048, %s27, [#allocation7], 512, 512, 32
    $region9: #{tpu_custom_call.1} parent=1 // pred_fallthru
      _
    // Predicated region
    $region10: #{tpu_custom_call.1} parent=1 // pred_check
      _
    $region11: #{tpu_custom_call.1} parent=1 // pred_check_branch
      %34 = sbr.rel (0) target = $region13
    $region12: #{tpu_custom_call.1} parent=1 // pred_region
      _
    $region13: #{tpu_custom_call.1} parent=1 // pred_fallthru
      _
    // Predicated region
    $region14: #{tpu_custom_call.1} parent=1 // pred_check
      _
    $region15: #{tpu_custom_call.1} parent=1 // pred_check_branch
      %36 = sbr.rel (0) target = $region17
    $region16: #{tpu_custom_call.1} parent=1 // pred_region
      %37 = dma.done [#allocation4], 256
    $region17: #{tpu_custom_call.1} parent=1 // pred_fallthru
      _
    // Predicated region
    $region18: #{tpu_custom_call.1} parent=1 // pred_check
      _
    $region19: #{tpu_custom_call.1} parent=1 // pred_check_branch
      %39 = sbr.rel (0) target = $region21
    $region20: #{tpu_custom_call.1} parent=1 // pred_region
      %40 = dma.done [#allocation7], 2048
    $region21: #{tpu_custom_call.1} parent=1 // pred_fallthru
      _
    %p42 = scmp.eq.s32.totalorder 0, 0
    // Predicated region
    $region22: #{tpu_custom_call.1} parent=1 // pred_check
      %p43 = pneg %p42
    $region23: #{tpu_custom_call.1} parent=1 // pred_check_branch
      %45 = sbr.rel (%p43) target = $region25
    $region24: #{tpu_custom_call.1} parent=1 // pred_region
      %v46 = vld [vmem:[%s2] sm:$0x1]
      %v48 = vlaneseq
      %v49 = vshrl.u32 %v48, 7
      %v50 = vsub.s32 0, %v49
      %v51 = vrot.slane %v46, %v50
      %vm53 = vcmask 254976
      %54 = vst.msk [vmem:[#allocation2] sm:$0x3] %vm53, %v51
    $region25: #{tpu_custom_call.1} parent=1 // pred_fallthru
      _
    %v55 = vld [vmem:[#allocation3] sm:$0xff]
    %v56 = vld [vmem:[#allocation3 + $0x8] sm:$0xff]
    %v59 = vcombine.high %v55, %v55
    %v61 = vunpack.c.l.s4 1983009808
    %v62 = vunpack.c.0.s8 %v61
    %v63 = vlaneseq
    %v64 = vshrl.u32 %v63, 7
    %v65 = vsub.s32 %v62, %v64
    %v66 = vrot.slane %v55, %v65
    %v68 = vunpack.c.l.s4 1983009808
    %v69 = vunpack.c.0.s8 %v68
    %v70 = vlaneseq
    %v71 = vshrl.u32 %v70, 7
    %v72 = vsub.s32 %v69, %v71
    %v73 = vrot.slane %v59, %v72
    %v74 = vcombine.high %v66, %v66
    %v75 = vcombine.high %v73, %v73
    %v76 = vcombine.high %v56, %v56
    %v78 = vunpack.c.l.s4 1983009808
    %v79 = vunpack.c.0.s8 %v78
    %v80 = vlaneseq
    %v81 = vshrl.u32 %v80, 7
    %v82 = vsub.s32 %v79, %v81
    %v83 = vrot.slane %v56, %v82
    %v85 = vunpack.c.l.s4 1983009808
    %v86 = vunpack.c.0.s8 %v85
    %v87 = vlaneseq
    %v88 = vshrl.u32 %v87, 7
    %v89 = vsub.s32 %v86, %v88
    %v90 = vrot.slane %v76, %v89
    %v91 = vcombine.high %v83, %v83
    %v92 = vcombine.high %v90, %v90
    %v101 = vpack.c.bf16 %v66, %v66
    %v102 = vpack.c.bf16 %v74, %v74
    %v103 = vpack.c.bf16 %v73, %v73
    %v104 = vpack.c.bf16 %v75, %v75
    %v105 = vpack.c.bf16 %v83, %v83
    %v106 = vpack.c.bf16 %v91, %v91
    %v107 = vpack.c.bf16 %v90, %v90
    %v108 = vpack.c.bf16 %v92, %v92
    %s109 = smul.u32 0, 1024
    %s110 = sshra.s32 %s109, 7
    %s111 = sand.u32 %s109, 127
    %s112 = smul.addr %s110, 4
    %s113 = scalar_lea.vmem [#allocation6], %s112
    %v114 = vld [vmem:[%s113] sm:$0xff]
    %v115 = vld [vmem:[%s113 + $0x8] sm:$0xff]
    %v116 = vld [vmem:[%s113 + $0x10] sm:$0xff]
    %v117 = vld [vmem:[%s113 + $0x18] sm:$0xff]
    %v118 = vld [vmem:[%s113 + $0x20] sm:$0xff]
    %v119 = vld [vmem:[%s113 + $0x28] sm:$0xff]
    %v120 = vld [vmem:[%s113 + $0x30] sm:$0xff]
    %v121 = vld [vmem:[%s113 + $0x38] sm:$0xff]
    %v122 = vld [vmem:[%s113 + $0x40] sm:$0xff]
    %v123 = vld [vmem:[%s113 + $0x48] sm:$0xff]
    %v124 = vld [vmem:[%s113 + $0x50] sm:$0xff]
    %v125 = vld [vmem:[%s113 + $0x58] sm:$0xff]
    %v126 = vld [vmem:[%s113 + $0x60] sm:$0xff]
    %v127 = vld [vmem:[%s113 + $0x68] sm:$0xff]
    %v128 = vld [vmem:[%s113 + $0x70] sm:$0xff]
    %v129 = vld [vmem:[%s113 + $0x78] sm:$0xff]
    %v130 = vld [vmem:[#allocation2] sm:$0x3]
    %v147 = vunpack.c.l.b16 %v114
    %v148 = vunpack.c.h.b16 %v114
    %v149 = vunpack.c.l.b16 %v115
    %v150 = vunpack.c.h.b16 %v115
    %v151 = vunpack.c.l.b16 %v116
    %v152 = vunpack.c.h.b16 %v116
    %v153 = vunpack.c.l.b16 %v117
    %v154 = vunpack.c.h.b16 %v117
    %v155 = vunpack.c.l.b16 %v118
    %v156 = vunpack.c.h.b16 %v118
    %v157 = vunpack.c.l.b16 %v119
    %v158 = vunpack.c.h.b16 %v119
    %v159 = vunpack.c.l.b16 %v120
    %v160 = vunpack.c.h.b16 %v120
    %v161 = vunpack.c.l.b16 %v121
    %v162 = vunpack.c.h.b16 %v121
    %v163 = vunpack.c.l.b16 %v122
    %v164 = vunpack.c.h.b16 %v122
    %v165 = vunpack.c.l.b16 %v123
    %v166 = vunpack.c.h.b16 %v123
    %v167 = vunpack.c.l.b16 %v124
    %v168 = vunpack.c.h.b16 %v124
    %v169 = vunpack.c.l.b16 %v125
    %v170 = vunpack.c.h.b16 %v125
    %v171 = vunpack.c.l.b16 %v126
    %v172 = vunpack.c.h.b16 %v126
    %v173 = vunpack.c.l.b16 %v127
    %v174 = vunpack.c.h.b16 %v127
    %v175 = vunpack.c.l.b16 %v128
    %v176 = vunpack.c.h.b16 %v128
    %v177 = vunpack.c.l.b16 %v129
    %v178 = vunpack.c.h.b16 %v129
    %v179 = vpack.c.b16 %v155, %v147
    %v180 = vpack.c.b16 %v156, %v148
    %v181 = vpack.c.b16 %v157, %v149
    %v182 = vpack.c.b16 %v158, %v150
    %v183 = vpack.c.b16 %v159, %v151
    %v184 = vpack.c.b16 %v160, %v152
    %v185 = vpack.c.b16 %v161, %v153
    %v186 = vpack.c.b16 %v162, %v154
    %v187 = vpack.c.b16 %v171, %v163
    %v188 = vpack.c.b16 %v172, %v164
    %v189 = vpack.c.b16 %v173, %v165
    %v190 = vpack.c.b16 %v174, %v166
    %v191 = vpack.c.b16 %v175, %v167
    %v192 = vpack.c.b16 %v176, %v168
    %v193 = vpack.c.b16 %v177, %v169
    %v194 = vpack.c.b16 %v178, %v170
    %211 = vmatprep.subr.bf16.mxu0 0
    %212 = vmatpush1.bf16.xpose.msra.mxu0 0
    %213 = vmatprep.subr.bf16.mxu0 0
    %214 = vmatpush1.bf16.xpose.msra.mxu0 0
    %215 = vmatprep.subr.bf16.mxu0 0
    %216 = vmatpush1.bf16.xpose.msra.mxu0 0
    %217 = vmatprep.subr.bf16.mxu0 0
    %218 = vmatpush1.bf16.xpose.msra.mxu0 0
    %219 = vmatprep.subr.bf16.mxu0 0
    %220 = vmatpush1.bf16.xpose.msra.mxu0 0
    %221 = vmatprep.subr.bf16.mxu0 0
    %222 = vmatpush1.bf16.xpose.msra.mxu0 0
    %223 = vmatprep.subr.bf16.mxu0 %v188
    %224 = vmatpush1.bf16.xpose.msra.mxu0 %v187
    %225 = vmatprep.subr.bf16.mxu0 %v180
    %226 = vmatpush1.bf16.xpose.msra.mxu0 %v179
    %227 = vmatprep.subr.bf16.mxu0 0
    %228 = vmatpush2.bf16.xpose.msra.mxu0 0
    %229 = vmatprep.subr.bf16.mxu0 0
    %230 = vmatpush2.bf16.xpose.msra.mxu0 0
    %231 = vmatprep.subr.bf16.mxu0 0
    %232 = vmatpush2.bf16.xpose.msra.mxu0 0
    %233 = vmatprep.subr.bf16.mxu0 0
    %234 = vmatpush2.bf16.xpose.msra.mxu0 0
    %235 = vmatprep.subr.bf16.mxu0 0
    %236 = vmatpush2.bf16.xpose.msra.mxu0 0
    %237 = vmatprep.subr.bf16.mxu0 0
    %238 = vmatpush2.bf16.xpose.msra.mxu0 0
    %239 = vmatprep.subr.bf16.mxu0 0
    %240 = vmatpush2.bf16.xpose.msra.mxu0 0
    %241 = vmatprep.subr.bf16.mxu0 0
    %242 = vmatpush2.bf16.xpose.msra.mxu0 0
    %243 = vmatprep.mubr.bf16.mxu0 %v102
    %244 = vmatmul.mubr.bf16.gmra.mxu0 %v101
    %v245 = vpop.f32.mrf.mxu0
    %v246 = vadd.f32 0.0, %v245
    %v247 = vpop.f32.mrf.mxu0
    %v248 = vpop.f32.mrf.mxu0
    %v249 = vpop.f32.mrf.mxu0
    %250 = vdwg.mxu0
    %251 = vmatprep.subr.bf16.mxu0 0
    %252 = vmatpush1.bf16.xpose.msra.mxu0 0
    %253 = vmatprep.subr.bf16.mxu0 0
    %254 = vmatpush1.bf16.xpose.msra.mxu0 0
    %255 = vmatprep.subr.bf16.mxu0 0
    %256 = vmatpush1.bf16.xpose.msra.mxu0 0
    %257 = vmatprep.subr.bf16.mxu0 0
    %258 = vmatpush1.bf16.xpose.msra.mxu0 0
    %259 = vmatprep.subr.bf16.mxu0 0
    %260 = vmatpush1.bf16.xpose.msra.mxu0 0
    %261 = vmatprep.subr.bf16.mxu0 0
    %262 = vmatpush1.bf16.xpose.msra.mxu0 0
    %263 = vmatprep.subr.bf16.mxu0 %v190
    %264 = vmatpush1.bf16.xpose.msra.mxu0 %v189
    %265 = vmatprep.subr.bf16.mxu0 %v182
    %266 = vmatpush1.bf16.xpose.msra.mxu0 %v181
    %267 = vmatprep.subr.bf16.mxu0 0
    %268 = vmatpush2.bf16.xpose.msra.mxu0 0
    %269 = vmatprep.subr.bf16.mxu0 0
    %270 = vmatpush2.bf16.xpose.msra.mxu0 0
    %271 = vmatprep.subr.bf16.mxu0 0
    %272 = vmatpush2.bf16.xpose.msra.mxu0 0
    %273 = vmatprep.subr.bf16.mxu0 0
    %274 = vmatpush2.bf16.xpose.msra.mxu0 0
    %275 = vmatprep.subr.bf16.mxu0 0
    %276 = vmatpush2.bf16.xpose.msra.mxu0 0
    %277 = vmatprep.subr.bf16.mxu0 0
    %278 = vmatpush2.bf16.xpose.msra.mxu0 0
    %279 = vmatprep.subr.bf16.mxu0 0
    %280 = vmatpush2.bf16.xpose.msra.mxu0 0
    %281 = vmatprep.subr.bf16.mxu0 0
    %282 = vmatpush2.bf16.xpose.msra.mxu0 0
    %283 = vmatprep.mubr.bf16.mxu0 %v104
    %284 = vmatmul.mubr.bf16.gmra.mxu0 %v103
    %v285 = vpop.f32.mrf.mxu0
    %v286 = vadd.f32 %v246, %v285
    %v287 = vpop.f32.mrf.mxu0
    %v288 = vpop.f32.mrf.mxu0
    %v289 = vpop.f32.mrf.mxu0
    %290 = vdwg.mxu0
    %291 = vmatprep.subr.bf16.mxu0 0
    %292 = vmatpush1.bf16.xpose.msra.mxu0 0
    %293 = vmatprep.subr.bf16.mxu0 0
    %294 = vmatpush1.bf16.xpose.msra.mxu0 0
    %295 = vmatprep.subr.bf16.mxu0 0
    %296 = vmatpush1.bf16.xpose.msra.mxu0 0
    %297 = vmatprep.subr.bf16.mxu0 0
    %298 = vmatpush1.bf16.xpose.msra.mxu0 0
    %299 = vmatprep.subr.bf16.mxu0 0
    %300 = vmatpush1.bf16.xpose.msra.mxu0 0
    %301 = vmatprep.subr.bf16.mxu0 0
    %302 = vmatpush1.bf16.xpose.msra.mxu0 0
    %303 = vmatprep.subr.bf16.mxu0 %v192
    %304 = vmatpush1.bf16.xpose.msra.mxu0 %v191
    %305 = vmatprep.subr.bf16.mxu0 %v184
    %306 = vmatpush1.bf16.xpose.msra.mxu0 %v183
    %307 = vmatprep.subr.bf16.mxu0 0
    %308 = vmatpush2.bf16.xpose.msra.mxu0 0
    %309 = vmatprep.subr.bf16.mxu0 0
    %310 = vmatpush2.bf16.xpose.msra.mxu0 0
    %311 = vmatprep.subr.bf16.mxu0 0
    %312 = vmatpush2.bf16.xpose.msra.mxu0 0
    %313 = vmatprep.subr.bf16.mxu0 0
    %314 = vmatpush2.bf16.xpose.msra.mxu0 0
    %315 = vmatprep.subr.bf16.mxu0 0
    %316 = vmatpush2.bf16.xpose.msra.mxu0 0
    %317 = vmatprep.subr.bf16.mxu0 0
    %318 = vmatpush2.bf16.xpose.msra.mxu0 0
    %319 = vmatprep.subr.bf16.mxu0 0
    %320 = vmatpush2.bf16.xpose.msra.mxu0 0
    %321 = vmatprep.subr.bf16.mxu0 0
    %322 = vmatpush2.bf16.xpose.msra.mxu0 0
    %323 = vmatprep.mubr.bf16.mxu0 %v106
    %324 = vmatmul.mubr.bf16.gmra.mxu0 %v105
    %v325 = vpop.f32.mrf.mxu0
    %v326 = vadd.f32 %v286, %v325
    %v327 = vpop.f32.mrf.mxu0
    %v328 = vpop.f32.mrf.mxu0
    %v329 = vpop.f32.mrf.mxu0
    %330 = vdwg.mxu0
    %331 = vmatprep.subr.bf16.mxu0 0
    %332 = vmatpush1.bf16.xpose.msra.mxu0 0
    %333 = vmatprep.subr.bf16.mxu0 0
    %334 = vmatpush1.bf16.xpose.msra.mxu0 0
    %335 = vmatprep.subr.bf16.mxu0 0
    %336 = vmatpush1.bf16.xpose.msra.mxu0 0
    %337 = vmatprep.subr.bf16.mxu0 0
    %338 = vmatpush1.bf16.xpose.msra.mxu0 0
    %339 = vmatprep.subr.bf16.mxu0 0
    %340 = vmatpush1.bf16.xpose.msra.mxu0 0
    %341 = vmatprep.subr.bf16.mxu0 0
    %342 = vmatpush1.bf16.xpose.msra.mxu0 0
    %343 = vmatprep.subr.bf16.mxu0 %v194
    %344 = vmatpush1.bf16.xpose.msra.mxu0 %v193
    %345 = vmatprep.subr.bf16.mxu0 %v186
    %346 = vmatpush1.bf16.xpose.msra.mxu0 %v185
    %347 = vmatprep.subr.bf16.mxu0 0
    %348 = vmatpush2.bf16.xpose.msra.mxu0 0
    %349 = vmatprep.subr.bf16.mxu0 0
    %350 = vmatpush2.bf16.xpose.msra.mxu0 0
    %351 = vmatprep.subr.bf16.mxu0 0
    %352 = vmatpush2.bf16.xpose.msra.mxu0 0
    %353 = vmatprep.subr.bf16.mxu0 0
    %354 = vmatpush2.bf16.xpose.msra.mxu0 0
    %355 = vmatprep.subr.bf16.mxu0 0
    %356 = vmatpush2.bf16.xpose.msra.mxu0 0
    %357 = vmatprep.subr.bf16.mxu0 0
    %358 = vmatpush2.bf16.xpose.msra.mxu0 0
    %359 = vmatprep.subr.bf16.mxu0 0
    %360 = vmatpush2.bf16.xpose.msra.mxu0 0
    %361 = vmatprep.subr.bf16.mxu0 0
    %362 = vmatpush2.bf16.xpose.msra.mxu0 0
    %363 = vmatprep.mubr.bf16.mxu0 %v108
    %364 = vmatmul.mubr.bf16.gmra.mxu0 %v107
    %v365 = vpop.f32.mrf.mxu0
    %v366 = vadd.f32 %v326, %v365
    %v367 = vpop.f32.mrf.mxu0
    %v368 = vpop.f32.mrf.mxu0
    %v369 = vpop.f32.mrf.mxu0
    %370 = vdwg.mxu0
    %v371 = vadd.f32 %v130, %v366
    %vm372 = vcmask 254976
    %373 = vst.msk [vmem:[#allocation2] sm:$0x3] %vm372, %v371
    // Predicated region
    $region26: #{tpu_custom_call.1} parent=1 // pred_check
      %p374 = pneg %p42
    $region27: #{tpu_custom_call.1} parent=1 // pred_check_branch
      %376 = sbr.rel (%p374) target = $region29
    $region28: #{tpu_custom_call.1} parent=1 // pred_region
      %v377 = vld [vmem:[#allocation2] sm:$0x3]
      %v378 = vlaneseq
      %v379 = vand.u32 %v378, 127
      %vm380 = vcmp.ge.s32.totalorder %v379, 0
      %vm381 = vcmp.lt.s32.totalorder %v379, 7
      %vm382 = vmand %vm380, %vm381
      %v383 = vsel %vm382, %v377, -inf
      %v384 = vsel %vm372, %v383, -inf
      %385 = vmax.xlane.f32.xlu0 %v384
      %v386 = vpop.xlane.xlu0 %385
      %vm387 = vcmp.eq.f32.partialorder %v383, %v386
      %vm388 = vmand %vm382, %vm387
      %v389 = vsel %vm388, %v379, 1073741824
      %v390 = vsel %vm372, %v389, 2147483647
      %v391 = vand.u32 %v390, 65535
      %v392 = vshra.s32 %v390, 16
      %v393 = vcvt.s32.f32 %v391
      %v394 = vcvt.s32.f32 %v392
      %395 = vmin.xlane.f32.xlu0 %v394
      %v396 = vpop.xlane.xlu0 %395
      %vm397 = vcmp.eq.f32.partialorder %v394, %v396
      %v398 = vsel %vm397, %v393, inf
      %399 = vmin.xlane.f32.xlu0 %v398
      %v400 = vpop.xlane.xlu0 %399
      %v401 = vcvt.f32.s32 %v400
      %v402 = vcvt.f32.s32 %v396
      %v403 = vshll.u32 %v402, 16
      %v404 = vadd.s32 %v403, %v401
      %vm405 = vcmp.ge.s32.totalorder %v379, 7
      %vm406 = vcmp.lt.s32.totalorder %v379, 9
      %vm407 = vmand %vm405, %vm406
      %v408 = vsel %vm407, %v377, -inf
      %v409 = vsel %vm372, %v408, -inf
      %410 = vmax.xlane.f32.xlu0 %v409
      %v411 = vpop.xlane.xlu0 %410
      %vm412 = vcmp.eq.f32.partialorder %v408, %v411
      %vm413 = vmand %vm407, %vm412
      %v414 = vsel %vm413, %v379, 1073741824
      %v415 = vsel %vm372, %v414, 2147483647
      %v416 = vand.u32 %v415, 65535
      %v417 = vshra.s32 %v415, 16
      %v418 = vcvt.s32.f32 %v416
      %v419 = vcvt.s32.f32 %v417
      %420 = vmin.xlane.f32.xlu0 %v419
      %v421 = vpop.xlane.xlu0 %420
      %vm422 = vcmp.eq.f32.partialorder %v419, %v421
      %v423 = vsel %vm422, %v418, inf
      %424 = vmin.xlane.f32.xlu0 %v423
      %v425 = vpop.xlane.xlu0 %424
      %v426 = vcvt.f32.s32 %v425
      %v427 = vcvt.f32.s32 %v421
      %v428 = vshll.u32 %v427, 16
      %v429 = vadd.s32 %v428, %v426
      %v430 = vsub.s32 %v429, 7
      %vm431 = vcmp.ge.s32.totalorder %v379, 9
      %vm432 = vcmp.lt.s32.totalorder %v379, 18
      %vm433 = vmand %vm431, %vm432
      %v434 = vsel %vm433, %v377, -inf
      %v435 = vsel %vm372, %v434, -inf
      %436 = vmax.xlane.f32.xlu0 %v435
      %v437 = vpop.xlane.xlu0 %436
      %vm438 = vcmp.eq.f32.partialorder %v434, %v437
      %vm439 = vmand %vm433, %vm438
      %v440 = vsel %vm439, %v379, 1073741824
      %v441 = vsel %vm372, %v440, 2147483647
      %v442 = vand.u32 %v441, 65535
      %v443 = vshra.s32 %v441, 16
      %v444 = vcvt.s32.f32 %v442
      %v445 = vcvt.s32.f32 %v443
      %446 = vmin.xlane.f32.xlu0 %v445
      %v447 = vpop.xlane.xlu0 %446
      %vm448 = vcmp.eq.f32.partialorder %v445, %v447
      %v449 = vsel %vm448, %v444, inf
      %450 = vmin.xlane.f32.xlu0 %v449
      %v451 = vpop.xlane.xlu0 %450
      %v452 = vcvt.f32.s32 %v451
      %v453 = vcvt.f32.s32 %v447
      %v454 = vshll.u32 %v453, 16
      %v455 = vadd.s32 %v454, %v452
      %v456 = vsub.s32 %v455, 9
      %vm457 = vcmp.eq.s32.totalorder %v379, 0
      %vm458 = vcmp.eq.s32.totalorder %v379, 1
      %vm459 = vcmp.eq.s32.totalorder %v379, 2
      %v460 = vsel %vm459, %v456, 0
      %v461 = vsel %vm458, %v430, %v460
      %v462 = vsel %vm457, %v404, %v461
      %463 = vst [vmem:[#allocation8] sm:$0x3] %v462
    $region29: #{tpu_custom_call.1} parent=1 // pred_fallthru
      _
    // Predicated region
    $region30: #{tpu_custom_call.1} parent=1 // pred_check
      _
    $region31: #{tpu_custom_call.1} parent=1 // pred_check_branch
      %465 = sbr.rel (0) target = $region33
    $region32: #{tpu_custom_call.1} parent=1 // pred_region
      %s467 = ssub.s32 32, 32
      %468 = vsyncadd [#allocation5], %s467
      %s470 = sshll.u32 [#allocation8], 4
      %s471 = int_to_ptr.vmem [resolvable:$true] %s470
      %473 = dma.vmem_to_hbm [thread:$0]  %s471, 32, %s3, [#allocation5]
    $region33: #{tpu_custom_call.1} parent=1 // pred_fallthru
      _
    // Predicated region
    $region34: #{tpu_custom_call.1} parent=1 // pred_check
      _
    $region35: #{tpu_custom_call.1} parent=1 // pred_check_branch
      %475 = sbr.rel (0) target = $region37
    $region36: #{tpu_custom_call.1} parent=1 // pred_region
      %476 = dma.done [#allocation5], 32
    $region37: #{tpu_custom_call.1} parent=1 // pred_fallthru
      _
    %477 = vsyncpa [#allocation4], 1
    %478 = vsyncpa [#allocation7], 1
    %479 = vsyncpa [#allocation5], 1

</llo_original>
